<compile_context>
chip_gen: v5e
topology: v5e:2x2
jax: 0.10.0
libtpu: 0.0.40
codegen_flags: <defaults>
</compile_context>

<pallas_src>
import jax
import jax.numpy as jnp
from jax.experimental import pallas as pl
from jax.experimental.pallas import tpu as pltpu


def critic_kernel(s_ref, a_ref, w1t_ref, w2t_ref, b12_ref, w3_ref, b3_ref,
                  q_ref):
    # Hidden layer: two tiny MXU dots (M=8) + fused bias, all f32.
    h = (jnp.dot(s_ref[...], w1t_ref[...], preferred_element_type=jnp.float32)
         + jnp.dot(a_ref[...], w2t_ref[...], preferred_element_type=jnp.float32)
         + b12_ref[...])
    h = jnp.maximum(h, 0.0)                                  # relu (VPU)
    # Output layer (128 -> 1): VPU multiply + lane reduction (XLU slot has
    # slack here, effectively free) instead of a degenerate N=1 MXU matmul.
    q = jnp.sum(h * w3_ref[...], axis=-1, keepdims=True) + b3_ref[0]
    q_ref[...] = q


def critic_forward(s, a, fused_params):
    """fused_params = (w1_t, w2_t, b12, w3_row, b3) prepared once at init."""
    w1_t, w2_t, b12, w3_row, b3 = fused_params
    B = s.shape[0]

    full = lambda shape: pl.BlockSpec(shape, lambda: (0,) * len(shape))
    return pl.pallas_call(
        critic_kernel,
        out_shape=jax.ShapeDtypeStruct((B, 1), jnp.float32),
        in_specs=[
            full(s.shape),        # s          (B, state_dim)   f32, VMEM
            full(a.shape),        # a          (B, action_dim)  f32, VMEM
            full(w1_t.shape),     # W1^T       (state_dim, 128) f32, VMEM
            full(w2_t.shape),     # W2^T       (action_dim,128) f32, VMEM
            full(b12.shape),      # b1 + b2    (1, 128)         f32, VMEM
            full(w3_row.shape),   # w3 row     (1, 128)         f32, VMEM
            pl.BlockSpec(memory_space=pltpu.MemorySpace.SMEM),  # b3 (1,) f32
        ],
        out_specs=full((B, 1)),
    )(s, a, w1_t, w2_t, b12, w3_row, b3)


def init_params(key, state_dim, action_dim, n_layer=128):
    """Parameters in the original PyTorch layout (W as (out, in))."""
    k1, k2, k3, k4, k5, k6 = jax.random.split(key, 6)
    w1 = 0.1 * jax.random.normal(k1, (n_layer, state_dim), jnp.float32)
    w2 = 0.1 * jax.random.normal(k2, (n_layer, action_dim), jnp.float32)
    w3 = 0.1 * jax.random.normal(k3, (1, n_layer), jnp.float32)
    b1 = 0.01 * jax.random.normal(k4, (1, n_layer), jnp.float32)
    b2 = 0.01 * jax.random.normal(k5, (1, n_layer), jnp.float32)
    b3 = 0.01 * jax.random.normal(k6, (1,), jnp.float32)
    return (w1, b1, w2, b2, w3, b3)


def fuse_params(params):
    """One-time (init) conversion to kernel layout: pre-transposed weights,
    fused hidden bias.  No per-call wrapper work remains."""
    w1, b1, w2, b2, w3, b3 = params
    w1_t = w1.T                      # (state_dim, 128)
    w2_t = w2.T                      # (action_dim, 128)
    b12 = b1 + b2                    # (1, 128)   exact fusion
    w3_row = w3                      # (1, 128)   row used by VPU reduce
    return (w1_t, w2_t, b12, w3_row, b3)


def critic_ref(s, a, params):
    """Pure-JAX reference matching the PyTorch module exactly (f32)."""
    w1, b1, w2, b2, w3, b3 = params
    x = s @ w1.T + b1
    y = a @ w2.T + b2
    h = jnp.maximum(x + y, 0.0)
    return h @ w3.T + b3


if __name__ == "__main__":
    key = jax.random.PRNGKey(0)
    k_s, k_a, k_p = jax.random.split(key, 3)

    B, state_dim, action_dim = 8, 16, 8
    s = jax.random.normal(k_s, (B, state_dim), jnp.float32)
    a = jax.random.normal(k_a, (B, action_dim), jnp.float32)
    params = init_params(k_p, state_dim, action_dim)
    fused = fuse_params(params)          # init-time, not per-call

    q = critic_forward(s, a, fused)
    jax.block_until_ready(q)

    q_ref = critic_ref(s, a, params)
    assert q.shape == (B, 1)
    # f32 end-to-end -> tight agreement with the reference.
    assert jnp.allclose(q, q_ref, atol=1e-5, rtol=1e-5)

    print("KERNEL_OK")
</pallas_src>

<mosaic_0001>
module attributes {stable_mosaic.version = 11 : i64} {
  func.func @critic_kernel(%arg0: memref<8x16xf32, #tpu.memory_space<vmem>>, %arg1: memref<8x8xf32, #tpu.memory_space<vmem>>, %arg2: memref<16x128xf32, #tpu.memory_space<vmem>>, %arg3: memref<8x128xf32, #tpu.memory_space<vmem>>, %arg4: memref<1x128xf32, #tpu.memory_space<vmem>>, %arg5: memref<1x128xf32, #tpu.memory_space<vmem>>, %arg6: memref<1xf32, #tpu.memory_space<smem>>, %arg7: memref<8x1xf32, #tpu.memory_space<vmem>>) attributes {dimension_semantics = [], scalar_prefetch = 0 : i64, scratch_operands = 0 : i64, tpu.core_type = #tpu.core_type<tc>} {
    %c0 = arith.constant 0 : index
    %c0_0 = arith.constant 0 : index
    %0 = vector.load %arg0[%c0, %c0_0] : memref<8x16xf32, #tpu.memory_space<vmem>>, vector<8x16xf32>
    %c0_1 = arith.constant 0 : index
    %c0_2 = arith.constant 0 : index
    %1 = vector.load %arg2[%c0_1, %c0_2] : memref<16x128xf32, #tpu.memory_space<vmem>>, vector<16x128xf32>
    %cst = arith.constant dense<0.000000e+00> : vector<8x128xf32>
    %2 = tpu.matmul %0, %1, %cst {dimension_numbers = #tpu.dot_dimension_numbers<[1], [0], [0], [1], [0, 0, 1, 1], [], []>} : vector<8x16xf32>, vector<16x128xf32>, vector<8x128xf32> -> vector<8x128xf32>
    %c0_3 = arith.constant 0 : index
    %c0_4 = arith.constant 0 : index
    %3 = vector.load %arg1[%c0_3, %c0_4] : memref<8x8xf32, #tpu.memory_space<vmem>>, vector<8x8xf32>
    %c0_5 = arith.constant 0 : index
    %c0_6 = arith.constant 0 : index
    %4 = vector.load %arg3[%c0_5, %c0_6] : memref<8x128xf32, #tpu.memory_space<vmem>>, vector<8x128xf32>
    %cst_7 = arith.constant dense<0.000000e+00> : vector<8x128xf32>
    %5 = tpu.matmul %3, %4, %cst_7 {dimension_numbers = #tpu.dot_dimension_numbers<[1], [0], [0], [1], [0, 0, 1, 1], [], []>} : vector<8x8xf32>, vector<8x128xf32>, vector<8x128xf32> -> vector<8x128xf32>
    %6 = arith.addf %2, %5 : vector<8x128xf32>
    %c0_8 = arith.constant 0 : index
    %c0_9 = arith.constant 0 : index
    %7 = vector.load %arg4[%c0_8, %c0_9] : memref<1x128xf32, #tpu.memory_space<vmem>>, vector<1x128xf32>
    %8 = vector.broadcast %7 : vector<1x128xf32> to vector<8x128xf32>
    %9 = arith.addf %6, %8 : vector<8x128xf32>
    %cst_10 = arith.constant 0.000000e+00 : f32
    %10 = vector.broadcast %cst_10 : f32 to vector<8x128xf32>
    %11 = arith.maximumf %9, %10 : vector<8x128xf32>
    %c0_11 = arith.constant 0 : index
    %c0_12 = arith.constant 0 : index
    %12 = vector.load %arg5[%c0_11, %c0_12] : memref<1x128xf32, #tpu.memory_space<vmem>>, vector<1x128xf32>
    %13 = vector.broadcast %12 : vector<1x128xf32> to vector<8x128xf32>
    %14 = arith.mulf %11, %13 : vector<8x128xf32>
    %cst_13 = arith.constant dense<0.000000e+00> : vector<8xf32>
    %15 = vector.multi_reduction <add>, %14, %cst_13 [1] : vector<8x128xf32> to vector<8xf32>
    %16 = vector.shape_cast %15 : vector<8xf32> to vector<8x1xf32>
    %c0_14 = arith.constant 0 : index
    %17 = memref.load %arg6[%c0_14] : memref<1xf32, #tpu.memory_space<smem>>
    %18 = vector.broadcast %17 : f32 to vector<8x1xf32>
    %19 = arith.addf %16, %18 : vector<8x1xf32>
    %c0_15 = arith.constant 0 : index
    %c0_16 = arith.constant 0 : index
    %20 = vector.load %arg7[%c0_15, %c0_16] : memref<8x1xf32, #tpu.memory_space<vmem>>, vector<8x1xf32>
    tpu.vector_store %arg7[%c0_15, %c0_16], %19 {strides = array<i32>} : memref<8x1xf32, #tpu.memory_space<vmem>>, vector<8x1xf32>,
    return
  }
}

</mosaic_0001>

<llo_original>
// kernel: tpu_custom_call.1
$region0: #{tpu_custom_call.1}
  #allocation0 [shape = 'u32[]', space=smem, size = 0x4, offset = 0x4, fixed_abs, tag = 'smem constant byte address 0x4 - core index']
  #allocation1 [shape = 'u32[72,128]{1,0:T(1,128)}', space=vmem, size = 0x9000, scoped, tag = 'internal scratch']
  #allocation2 [shape = 'f32[1]{0:T(128)S(6)}', space=smem, size = 0x200, scoped, tag = 'scoped memory for tpu_custom_call.1']
  %s0 = inlined_call_operand.hbm [shape: f32[8,16], index: 0, kind: input, shape index: {}]
  %s1 = inlined_call_operand.hbm [shape: f32[8,8], index: 1, kind: input, shape index: {}]
  %s2 = inlined_call_operand.hbm [shape: f32[16,128], index: 2, kind: input, shape index: {}]
  %s3 = inlined_call_operand.hbm [shape: f32[8,128], index: 3, kind: input, shape index: {}]
  %s4 = inlined_call_operand.vmem [shape: f32[1,128], index: 4, kind: input, shape index: {}]
  %s5 = inlined_call_operand.vmem [shape: f32[1,128], index: 5, kind: input, shape index: {}]
  %s6 = inlined_call_operand.<no memory space> [shape: f32[1], index: 6, kind: input, shape index: {}]
  %s7 = inlined_call_operand.vmem [shape: f32[8,1], index: 7, kind: output, shape index: {}]
  %s8 = sld [smem:[#allocation0]]
  $region54: #{tpu_custom_call.1} parent=0
    _
  %s10 = ssub.s32 1, %s8
  %s11 = scalar_select 0, %s10, %s8
  %12 = sst [smem:[#allocation2]] %s6
  $region1: #{tpu_custom_call.1} parent=0
    #allocation3 [shape = 'u8[4096]{0}', space=vmem, size = 0x1000, scoped, tag = 'input window, operand 0, single buffered']
    #allocation4 [shape = 's32[1]{0}', space=sflag, size = 0x4, scoped, tag = 'scoped memory for tpu_custom_call.1']
    #allocation5 [shape = 'u8[4096]{0}', space=vmem, size = 0x1000, scoped, tag = 'input window, operand 1, single buffered']
    #allocation6 [shape = 's32[1]{0}', space=sflag, size = 0x4, scoped, tag = 'scoped memory for tpu_custom_call.1']
    #allocation7 [shape = 'u8[8192]{0}', space=vmem, size = 0x2000, scoped, tag = 'input window, operand 2, single buffered']
    #allocation8 [shape = 'u8[4096]{0}', space=vmem, size = 0x1000, scoped, tag = 'input window, operand 3, single buffered']
    #allocation9 [shape = 's32[1]{0}', space=sflag, size = 0x4, scoped, tag = 'scoped memory for tpu_custom_call.1']
    %13 = vsyncpa [#allocation4], 0
    %14 = vsyncpa [#allocation6], 0
    %15 = vsyncpa [#allocation9], 0
    // Predicated region
    $region2: #{tpu_custom_call.1} parent=1 // pred_check
      _
    $region3: #{tpu_custom_call.1} parent=1 // pred_check_branch
      %17 = sbr.rel (0) target = $region5
    $region4: #{tpu_custom_call.1} parent=1 // pred_region
      %19 = vsyncadd [#allocation4], 0
      %s21 = sshll.u32 %s0, 4
      %s22 = int_to_ptr.hbm [resolvable:$true] %s21
      %s23 = sshll.u32 [#allocation3], 4
      %s24 = int_to_ptr.vmem [resolvable:$true] %s23
      %26 = dma.hbm_to_vmem [thread:$0]  %s22, 128, %s24, [#allocation4]
    $region5: #{tpu_custom_call.1} parent=1 // pred_fallthru
      _
    // Predicated region
    $region6: #{tpu_custom_call.1} parent=1 // pred_check
      _
    $region7: #{tpu_custom_call.1} parent=1 // pred_check_branch
      %28 = sbr.rel (0) target = $region9
    $region8: #{tpu_custom_call.1} parent=1 // pred_region
      %30 = vsyncadd [#allocation6], 0
      %s32 = sshll.u32 %s1, 4
      %s33 = int_to_ptr.hbm [resolvable:$true] %s32
      %s34 = sshll.u32 [#allocation5], 4
      %s35 = int_to_ptr.vmem [resolvable:$true] %s34
      %37 = dma.hbm_to_vmem [thread:$0]  %s33, 128, %s35, [#allocation6]
    $region9: #{tpu_custom_call.1} parent=1 // pred_fallthru
      _
    // Predicated region
    $region10: #{tpu_custom_call.1} parent=1 // pred_check
      _
    $region11: #{tpu_custom_call.1} parent=1 // pred_check_branch
      %39 = sbr.rel (0) target = $region13
    $region12: #{tpu_custom_call.1} parent=1 // pred_region
      %41 = vsyncadd [#allocation6], 0
      %s42 = sshll.u32 %s2, 4
      %s43 = int_to_ptr.hbm [resolvable:$true] %s42
      %s44 = sshll.u32 [#allocation7], 4
      %s45 = int_to_ptr.vmem [resolvable:$true] %s44
      %50 = dma.hbm_to_vmem [thread:$0]  %s43, 256, %s45, [#allocation6], 128, 128, 8
    $region13: #{tpu_custom_call.1} parent=1 // pred_fallthru
      _
    // Predicated region
    $region14: #{tpu_custom_call.1} parent=1 // pred_check
      _
    $region15: #{tpu_custom_call.1} parent=1 // pred_check_branch
      %52 = sbr.rel (0) target = $region17
    $region16: #{tpu_custom_call.1} parent=1 // pred_region
      %54 = vsyncadd [#allocation9], 0
      %s56 = sshll.u32 %s3, 4
      %s57 = int_to_ptr.hbm [resolvable:$true] %s56
      %s58 = sshll.u32 [#allocation8], 4
      %s59 = int_to_ptr.vmem [resolvable:$true] %s58
      %61 = dma.hbm_to_vmem [thread:$0]  %s57, 128, %s59, [#allocation9]
    $region17: #{tpu_custom_call.1} parent=1 // pred_fallthru
      _
    // Predicated region
    $region18: #{tpu_custom_call.1} parent=1 // pred_check
      _
    $region19: #{tpu_custom_call.1} parent=1 // pred_check_branch
      %63 = sbr.rel (0) target = $region21
    $region20: #{tpu_custom_call.1} parent=1 // pred_region
      _
    $region21: #{tpu_custom_call.1} parent=1 // pred_fallthru
      _
    // Predicated region
    $region22: #{tpu_custom_call.1} parent=1 // pred_check
      _
    $region23: #{tpu_custom_call.1} parent=1 // pred_check_branch
      %65 = sbr.rel (0) target = $region25
    $region24: #{tpu_custom_call.1} parent=1 // pred_region
      _
    $region25: #{tpu_custom_call.1} parent=1 // pred_fallthru
      _
    // Predicated region
    $region26: #{tpu_custom_call.1} parent=1 // pred_check
      _
    $region27: #{tpu_custom_call.1} parent=1 // pred_check_branch
      %67 = sbr.rel (0) target = $region29
    $region28: #{tpu_custom_call.1} parent=1 // pred_region
      _
    $region29: #{tpu_custom_call.1} parent=1 // pred_fallthru
      _
    // Predicated region
    $region30: #{tpu_custom_call.1} parent=1 // pred_check
      _
    $region31: #{tpu_custom_call.1} parent=1 // pred_check_branch
      %69 = sbr.rel (0) target = $region33
    $region32: #{tpu_custom_call.1} parent=1 // pred_region
      %71 = dma.done [#allocation4], 128
    $region33: #{tpu_custom_call.1} parent=1 // pred_fallthru
      _
    // Predicated region
    $region34: #{tpu_custom_call.1} parent=1 // pred_check
      _
    $region35: #{tpu_custom_call.1} parent=1 // pred_check_branch
      %73 = sbr.rel (0) target = $region37
    $region36: #{tpu_custom_call.1} parent=1 // pred_region
      %75 = dma.done [#allocation6], 128
    $region37: #{tpu_custom_call.1} parent=1 // pred_fallthru
      _
    // Predicated region
    $region38: #{tpu_custom_call.1} parent=1 // pred_check
      _
    $region39: #{tpu_custom_call.1} parent=1 // pred_check_branch
      %77 = sbr.rel (0) target = $region41
    $region40: #{tpu_custom_call.1} parent=1 // pred_region
      %79 = dma.done [#allocation6], 256
    $region41: #{tpu_custom_call.1} parent=1 // pred_fallthru
      _
    // Predicated region
    $region42: #{tpu_custom_call.1} parent=1 // pred_check
      _
    $region43: #{tpu_custom_call.1} parent=1 // pred_check_branch
      %81 = sbr.rel (0) target = $region45
    $region44: #{tpu_custom_call.1} parent=1 // pred_region
      %83 = dma.done [#allocation9], 128
    $region45: #{tpu_custom_call.1} parent=1 // pred_fallthru
      _
    %v84 = vld [vmem:[#allocation3] sm:$0xff]
    %v85 = vld [vmem:[#allocation7] sm:$0xff]
    %v86 = vld [vmem:[#allocation7 + $0x8] sm:$0xff]
    %v87 = vld [vmem:[#allocation5] sm:$0xff]
    %v88 = vld [vmem:[#allocation8] sm:$0xff]
    %vm89 = vcmask 64512
    %v91 = vsel %vm89, %v87, 0
    %93 = vmatpush.msra.mxu0 0.0
    %94 = vmatpush.msra.mxu0 0.0
    %95 = vmatpush.msra.mxu0 0.0
    %96 = vmatpush.msra.mxu0 0.0
    %97 = vmatpush.msra.mxu0 0.0
    %98 = vmatpush.msra.mxu0 0.0
    %99 = vmatpush.msra.mxu0 0.0
    %100 = vmatpush.msra.mxu0 0.0
    %101 = vmatpush.msra.mxu0 0.0
    %102 = vmatpush.msra.mxu0 0.0
    %103 = vmatpush.msra.mxu0 0.0
    %104 = vmatpush.msra.mxu0 0.0
    %105 = vmatpush.msra.mxu0 0.0
    %106 = vmatpush.msra.mxu0 0.0
    %107 = vmatpush.msra.mxu0 0.0
    %108 = vmatpush.msra.mxu0 %v88
    %109 = vmatmul.f32.gmra.mxu0 %v91
    %v110 = vpop.f32.mrf.mxu0
    %v111 = vadd.f32 0.0, %v110
    %112 = vdwg.mxu0
    %vm113 = vcmask 130048
    %v115 = vsel %vm113, %v84, 0
    %117 = vmatpush.msra.mxu0 0.0
    %118 = vmatpush.msra.mxu0 0.0
    %119 = vmatpush.msra.mxu0 0.0
    %120 = vmatpush.msra.mxu0 0.0
    %121 = vmatpush.msra.mxu0 0.0
    %122 = vmatpush.msra.mxu0 0.0
    %123 = vmatpush.msra.mxu0 0.0
    %124 = vmatpush.msra.mxu0 0.0
    %125 = vmatpush.msra.mxu0 0.0
    %126 = vmatpush.msra.mxu0 0.0
    %127 = vmatpush.msra.mxu0 0.0
    %128 = vmatpush.msra.mxu0 0.0
    %129 = vmatpush.msra.mxu0 0.0
    %130 = vmatpush.msra.mxu0 0.0
    %131 = vmatpush.msra.mxu0 %v86
    %132 = vmatpush.msra.mxu0 %v85
    %133 = vmatmul.f32.gmra.mxu0 %v115
    %v134 = vpop.f32.mrf.mxu0
    %v135 = vadd.f32 %v111, %v134
    %136 = vdwg.mxu0
    %v137 = vld [vmem:[%s4] sm:$0x1]
    %v139 = vperm.slane %v137, 0
    %v141 = vadd.f32 %v135, %v139
    %v142 = vmax.f32 %v141, 0.0
    %v143 = vld [vmem:[%s5] sm:$0x1]
    %v145 = vperm.slane %v143, 0
    %v147 = vmul.f32 %v142, %v145
    %148 = vadd.xlane.f32.xlu0 %v147
    %v149 = vpop.xlane.xlu0 %148
    %s150 = sld [smem:[#allocation2]]
    %v151 = vstv %s150
    %v152 = vadd.f32 %v149, %v151
    %vm153 = vcmask 7168
    %154 = vst.msk [vmem:[%s7] sm:$0xff] %vm153, %v152
    // Predicated region
    $region46: #{tpu_custom_call.1} parent=1 // pred_check
      _
    $region47: #{tpu_custom_call.1} parent=1 // pred_check_branch
      %156 = sbr.rel (0) target = $region49
    $region48: #{tpu_custom_call.1} parent=1 // pred_region
      _
    $region49: #{tpu_custom_call.1} parent=1 // pred_fallthru
      _
    // Predicated region
    $region50: #{tpu_custom_call.1} parent=1 // pred_check
      _
    $region51: #{tpu_custom_call.1} parent=1 // pred_check_branch
      %158 = sbr.rel (0) target = $region53
    $region52: #{tpu_custom_call.1} parent=1 // pred_region
      _
    $region53: #{tpu_custom_call.1} parent=1 // pred_fallthru
      _
    %159 = vsyncpa [#allocation4], 1
    %160 = vsyncpa [#allocation6], 1
    %161 = vsyncpa [#allocation9], 1

</llo_original>
